<compile_context>
chip_gen: v7x
topology: tpu7x:2x2x1
jax: 0.10.0
libtpu: 0.0.40
codegen_flags: <defaults>
</compile_context>

<pallas_src>
import jax
import jax.numpy as jnp
from jax.experimental import pallas as pl
from jax.experimental.pallas import tpu as pltpu


def _make_stats_kernel(n_rows: int, blocks_per_p: int, tl: int):
    """CE / count / argmax-mismatch accumulation kernel.

    Inputs per grid step:
      pred_ref : (C, tl) class-major logits block
      idx_ref  : (2, tl) int32 block; row 0 = target class index (-1 => invalid
                 row), row 1 = argmax(noisy) class index.
    Output block (per partition, resident across the inner grid axis):
      (3, tl) f32 lane-dense partial accumulator:
        row 0: sum of masked per-row cross-entropy
        row 1: count of masked (valid) rows
        row 2: count of masked rows with argmax(pred) != argmax(noisy)
    """

    def kernel(pred_ref, idx_ref, out_ref):
        p = pl.program_id(0)
        j = pl.program_id(1)

        @pl.when(j == 0)
        def _init():
            out_ref[...] = jnp.zeros_like(out_ref)

        pred = pred_ref[...].astype(jnp.float32)          # (C, tl)
        c = pred.shape[0]
        tgt = idx_ref[0:1, :]                             # (1, tl) int32
        ntg = idx_ref[1:2, :]                             # (1, tl) int32

        # Global column block id.  The input index_map clamps to the last real
        # block, but unclamped positions are >= n_rows, so this mask kills the
        # ragged tail and any duplicated (clamped) grid step.
        gb = p * blocks_per_p + j
        pos = gb * tl + jax.lax.broadcasted_iota(jnp.int32, (1, tl), 1)
        valid = jnp.logical_and(pos < n_rows, tgt >= 0)   # (1, tl) bool

        ridx = jax.lax.broadcasted_iota(jnp.int32, (c, tl), 0)

        # Single shared max over classes: feeds logsumexp AND the mismatch test.
        mx_p = jnp.max(pred, axis=0, keepdims=True)                           # (1, tl)
        lse = jnp.log(jnp.sum(jnp.exp(pred - mx_p), axis=0, keepdims=True)) + mx_p
        picked = jnp.sum(jnp.where(ridx == tgt, pred, 0.0),
                         axis=0, keepdims=True)                               # pred[tgt]
        ce = lse - picked                                                     # (1, tl)

        # argmax(pred) != argmax(noisy)  <=>  pred[noisy_idx] < max(pred)
        # (identical for tie-free logits; ties in pred are measure-zero).
        pred_at_noisy = jnp.sum(jnp.where(ridx == ntg, pred, 0.0),
                                axis=0, keepdims=True)
        mism = jnp.logical_and(valid, pred_at_noisy < mx_p)

        # Build the (3, tl) update in-register (sublane select) so the three
        # accumulator updates become a single fused (3, tl) load+add+store.
        ce_m = jnp.where(valid, ce, 0.0)        # where() keeps tail NaNs out
        vf = valid.astype(jnp.float32)
        mf = mism.astype(jnp.float32)
        row = jax.lax.broadcasted_iota(jnp.int32, (3, tl), 0)
        contrib = jnp.where(row == 0, ce_m, jnp.where(row == 1, vf, mf))
        out_ref[...] += contrib

    return kernel


def _ce_stats(pred, true, noisy, *, tl=32768, num_partitions=1):
    """Returns (sum_CE_over_valid_rows, num_valid_rows, num_argmax_mismatches).

    `valid` rows are those with any nonzero entry in `true` (PyTorch mask).
    """
    n, c = pred.shape

    # Compact target streams, computed in JAX so they fuse with whatever
    # produced the one-hots.  Only `pred` must be seen densely by the kernel,
    # and it is presented class-major for lane-dense sublane reductions.
    # TODO(synk): emit pred class-major upstream to drop this transpose.
    pred_t = pred.T                                                   # (c, n)
    valid = jnp.any(true != 0, axis=-1)
    tgt = jnp.where(valid, jnp.argmax(true, axis=-1), -1).astype(jnp.int32)
    ntg = jnp.argmax(noisy, axis=-1).astype(jnp.int32)
    idx = jnp.stack([tgt, ntg], axis=0)                               # (2, n)

    tl = max(128, min(int(tl), pl.cdiv(n, 128) * 128))
    num_blocks = pl.cdiv(n, tl)
    P = max(1, int(num_partitions))
    J = pl.cdiv(num_blocks, P)

    def in_map(p, j):
        # Clamp so any (P*J > num_blocks) tail step re-reads the last real
        # block instead of issuing an out-of-bounds DMA; its contribution is
        # fully masked out inside the kernel via `pos < n_rows`.
        return (0, jnp.minimum(p * J + j, num_blocks - 1))

    kernel = _make_stats_kernel(n_rows=n, blocks_per_p=J, tl=tl)

    partials = pl.pallas_call(
        kernel,
        out_shape=jax.ShapeDtypeStruct((P, 3, tl), jnp.float32),
        grid=(P, J),
        in_specs=[
            pl.BlockSpec((c, tl), in_map),     # class-major pred
            pl.BlockSpec((2, tl), in_map),     # [target idx; noisy idx]
        ],
        out_specs=pl.BlockSpec((None, 3, tl), lambda p, j: (p, 0, 0)),
        compiler_params=pltpu.CompilerParams(
            dimension_semantics=("parallel", "arbitrary"),
            vmem_limit_bytes=32 * 1024 * 1024),
    )(pred_t, idx)

    sums = jnp.sum(partials, axis=(0, 2))     # (3,) tiny final reduce in JAX
    return sums[0], sums[1], sums[2]


def _ce_mean_dense(pred, true):
    """Plain-JAX mean cross-entropy with argmax targets (tiny y path)."""
    pred = pred.astype(jnp.float32)
    true = true.astype(jnp.float32)
    tgt = jnp.argmax(true, axis=-1)
    lse = jax.nn.logsumexp(pred, axis=-1)
    picked = jnp.take_along_axis(pred, tgt[:, None], axis=-1)[:, 0]
    return jnp.mean(lse - picked)


class ValLossDiscretePallas:
    """JAX/Pallas port of ValLossDiscrete.forward (single-batch value only).

    CrossEntropyMetric(preds, target_probs) is reproduced as
    mean_i CE(preds_i, argmax(target_probs_i)) over the masked rows.
    """

    def __init__(self, lambda_val):
        self.lambda_val = (float(lambda_val[0]), float(lambda_val[1]))

    def __call__(self, masked_pred_X, masked_pred_E, pred_y,
                 true_X, true_E, true_y,
                 noisy_X_t, noisy_E_t, t, t_e, log: bool = False):
        dx = true_X.shape[-1]
        de = true_E.shape[-1]

        tX = true_X.reshape(-1, dx)
        pX = masked_pred_X.reshape(-1, dx)
        nX = noisy_X_t.reshape(-1, dx)

        tE = true_E.reshape(-1, de)
        pE = masked_pred_E.reshape(-1, de)
        nE = noisy_E_t.reshape(-1, de)

        if tX.size > 0:
            ce_x, cnt_x, diff_x = _ce_stats(pX, tX, nX)
            loss_x = ce_x / cnt_x        # parity with PyTorch: NaN if mask empty
        else:
            loss_x = jnp.float32(0.0)
            diff_x = jnp.float32(0.0)

        if tE.size > 0:
            ce_e, cnt_e, diff_e = _ce_stats(pE, tE, nE)
            loss_e = ce_e / cnt_e
        else:
            loss_e = jnp.float32(0.0)
            diff_e = jnp.float32(0.0)

        # y path: tiny (bs, dy) -> plain JAX, not worth a kernel launch.
        loss_y = _ce_mean_dense(pred_y, true_y) if true_y.size > 0 else jnp.float32(0.0)

        t = jnp.asarray(t, jnp.float32)
        t_e = jnp.asarray(t_e, jnp.float32)
        diff_nodes_loss = jnp.mean((diff_x - t) ** 2)
        diff_edges_loss = jnp.mean((diff_e - t_e) ** 2)
        diff_loss = diff_nodes_loss + diff_edges_loss

        # TODO(synk): wandb logging and the torchmetrics cross-batch state
        # (compute()/reset()/log_epoch_metrics) have no kernel equivalent;
        # only the per-batch forward value is returned.
        return (loss_x
                + self.lambda_val[0] * loss_e
                + self.lambda_val[1] * loss_y
                + diff_loss)


def _reference_loss(masked_pred_X, masked_pred_E, pred_y,
                    true_X, true_E, true_y, noisy_X_t, noisy_E_t,
                    t, t_e, lambda_val):
    """Pure-JAX mirror of the PyTorch forward, for correctness checking."""
    dx = true_X.shape[-1]
    de = true_E.shape[-1]
    tX = true_X.reshape(-1, dx).astype(jnp.float32)
    pX = masked_pred_X.reshape(-1, dx).astype(jnp.float32)
    nX = noisy_X_t.reshape(-1, dx).astype(jnp.float32)
    tE = true_E.reshape(-1, de).astype(jnp.float32)
    pE = masked_pred_E.reshape(-1, de).astype(jnp.float32)
    nE = noisy_E_t.reshape(-1, de).astype(jnp.float32)
    mX = jnp.any(tX != 0.0, axis=-1)
    mE = jnp.any(tE != 0.0, axis=-1)

    def masked_ce(pred, true, mask):
        tgt = jnp.argmax(true, axis=-1)
        per = (jax.nn.logsumexp(pred, axis=-1)
               - jnp.take_along_axis(pred, tgt[:, None], axis=-1)[:, 0])
        return jnp.sum(jnp.where(mask, per, 0.0)) / jnp.sum(mask)

    loss_x = masked_ce(pX, tX, mX)
    loss_e = masked_ce(pE, tE, mE)
    loss_y = _ce_mean_dense(pred_y, true_y)
    diff_x = jnp.sum(jnp.where(mX, jnp.argmax(pX, -1) != jnp.argmax(nX, -1),
                               False)).astype(jnp.float32)
    diff_e = jnp.sum(jnp.where(mE, jnp.argmax(pE, -1) != jnp.argmax(nE, -1),
                               False)).astype(jnp.float32)
    t = jnp.asarray(t, jnp.float32)
    t_e = jnp.asarray(t_e, jnp.float32)
    diff_loss = jnp.mean((diff_x - t) ** 2) + jnp.mean((diff_e - t_e) ** 2)
    return loss_x + lambda_val[0] * loss_e + lambda_val[1] * loss_y + diff_loss


if __name__ == "__main__":
    key = jax.random.PRNGKey(0)
    bs, n, dx, de, dy = 2, 16, 5, 5, 3

    ks = jax.random.split(key, 8)

    # node validity mask (some padded nodes -> all-zero true rows)
    node_mask = jnp.array(
        [[1] * n, [1] * (n - 3) + [0] * 3], dtype=jnp.float32)      # (bs, n)
    edge_mask = node_mask[:, :, None] * node_mask[:, None, :]       # (bs, n, n)

    # one-hot targets, zeroed where masked
    true_X = jax.nn.one_hot(
        jax.random.randint(ks[0], (bs, n), 0, dx), dx) * node_mask[..., None]
    true_E = jax.nn.one_hot(
        jax.random.randint(ks[1], (bs, n, n), 0, de), de) * edge_mask[..., None]
    true_y = jax.nn.one_hot(jax.random.randint(ks[2], (bs,), 0, dy), dy)

    noisy_X_t = jax.nn.one_hot(
        jax.random.randint(ks[3], (bs, n), 0, dx), dx) * node_mask[..., None]
    noisy_E_t = jax.nn.one_hot(
        jax.random.randint(ks[4], (bs, n, n), 0, de), de) * edge_mask[..., None]

    masked_pred_X = jax.random.normal(ks[5], (bs, n, dx), jnp.float32)
    masked_pred_E = jax.random.normal(ks[6], (bs, n, n, de), jnp.float32)
    pred_y = jax.random.normal(ks[7], (bs, dy), jnp.float32)

    t = jnp.float32(3.0)
    t_e = jnp.float32(10.0)

    lam = (5.0, 0.0)
    loss_fn = ValLossDiscretePallas(lambda_val=lam)
    total = loss_fn(masked_pred_X, masked_pred_E, pred_y,
                    true_X, true_E, true_y,
                    noisy_X_t, noisy_E_t, t, t_e)
    total = jax.block_until_ready(total)

    ref = jax.block_until_ready(
        _reference_loss(masked_pred_X, masked_pred_E, pred_y,
                        true_X, true_E, true_y,
                        noisy_X_t, noisy_E_t, t, t_e, lam))
    assert jnp.allclose(total, ref, rtol=1e-4, atol=1e-3), (total, ref)

    print("KERNEL_OK")
</pallas_src>

<mosaic_0001>
module attributes {stable_mosaic.version = 11 : i64} {
  func.func @kernel(%arg0: i32, %arg1: i32, %arg2: memref<5x128xf32, #tpu.memory_space<vmem>>, %arg3: memref<2x128xi32, #tpu.memory_space<vmem>>, %arg4: memref<1x3x128xf32, #tpu.memory_space<vmem>>) attributes {dimension_semantics = [#tpu.dimension_semantics<parallel>, #tpu.dimension_semantics<arbitrary>], iteration_bounds = array<i64: 1, 1>, scalar_prefetch = 0 : i64, scratch_operands = 0 : i64, tpu.core_type = #tpu.core_type<tc>, window_params = [{transform_indices = @transform_0, window_bounds = array<i64: 5, 128>}, {transform_indices = @transform_1, window_bounds = array<i64: 2, 128>}, {transform_indices = @transform_2, window_bounds = array<i64: 1, 3, 128>}]} {
    %c0_i32 = arith.constant 0 : i32
    %0 = arith.cmpi eq, %arg1, %c0_i32 : i32
    %1 = arith.extui %0 : i1 to i32
    %c0_i32_0 = arith.constant 0 : i32
    %2 = arith.cmpi ne, %1, %c0_i32_0 : i32
    scf.if %2 {
      %cst_20 = arith.constant 0.000000e+00 : f32
      %67 = vector.broadcast %cst_20 : f32 to vector<3x128xf32>
      %c0_21 = arith.constant 0 : index
      %c0_22 = arith.constant 0 : index
      %c0_23 = arith.constant 0 : index
      %68 = vector.load %arg4[%c0_21, %c0_22, %c0_23] : memref<1x3x128xf32, #tpu.memory_space<vmem>>, vector<1x3x128xf32>
      %69 = vector.shape_cast %68 : vector<1x3x128xf32> to vector<3x128xf32>
      %70 = vector.shape_cast %67 : vector<3x128xf32> to vector<1x3x128xf32>
      tpu.vector_store %arg4[%c0_21, %c0_22, %c0_23], %70 {strides = array<i32>} : memref<1x3x128xf32, #tpu.memory_space<vmem>>, vector<1x3x128xf32>,
    } else {
    }
    %c0 = arith.constant 0 : index
    %c0_1 = arith.constant 0 : index
    %3 = vector.load %arg2[%c0, %c0_1] : memref<5x128xf32, #tpu.memory_space<vmem>>, vector<5x128xf32>
    %c0_2 = arith.constant 0 : index
    %c0_3 = arith.constant 0 : index
    %4 = vector.load %arg3[%c0_2, %c0_3] : memref<2x128xi32, #tpu.memory_space<vmem>>, vector<1x128xi32>
    %c1 = arith.constant 1 : index
    %c0_4 = arith.constant 0 : index
    %5 = vector.load %arg3[%c1, %c0_4] : memref<2x128xi32, #tpu.memory_space<vmem>>, vector<1x128xi32>
    %c1_i32 = arith.constant 1 : i32
    %6 = arith.muli %arg0, %c1_i32 : i32
    %7 = arith.addi %6, %arg1 : i32
    %c128_i32 = arith.constant 128 : i32
    %8 = arith.muli %7, %c128_i32 : i32
    %9 = tpu.iota {dimensions = array<i32: 1>} : vector<1x128xi32>
    %10 = vector.broadcast %8 : i32 to vector<1x128xi32>
    %11 = arith.addi %10, %9 : vector<1x128xi32>
    %c32_i32 = arith.constant 32 : i32
    %12 = vector.broadcast %c32_i32 : i32 to vector<1x128xi32>
    %13 = arith.cmpi slt, %11, %12 : vector<1x128xi32>
    %c0_i32_5 = arith.constant 0 : i32
    %14 = vector.broadcast %c0_i32_5 : i32 to vector<1x128xi32>
    %15 = arith.cmpi sge, %4, %14 : vector<1x128xi32>
    %16 = arith.andi %13, %15 : vector<1x128xi1>
    %17 = tpu.iota {dimensions = array<i32: 0>} : vector<5x128xi32>
    %cst = arith.constant dense<0xFF800000> : vector<128xf32>
    %18 = vector.multi_reduction <maximumf>, %3, %cst [0] : vector<5x128xf32> to vector<128xf32>
    %19 = vector.shape_cast %18 : vector<128xf32> to vector<1x128xf32>
    %20 = vector.broadcast %19 : vector<1x128xf32> to vector<5x128xf32>
    %21 = arith.subf %3, %20 : vector<5x128xf32>
    %22 = math.exp %21 : vector<5x128xf32>
    %cst_6 = arith.constant dense<0.000000e+00> : vector<128xf32>
    %23 = vector.multi_reduction <add>, %22, %cst_6 [0] : vector<5x128xf32> to vector<128xf32>
    %24 = vector.shape_cast %23 : vector<128xf32> to vector<1x128xf32>
    %25 = math.log %24 : vector<1x128xf32>
    %26 = arith.addf %25, %19 : vector<1x128xf32>
    %27 = vector.broadcast %4 : vector<1x128xi32> to vector<5x128xi32>
    %28 = arith.cmpi eq, %17, %27 : vector<5x128xi32>
    %cst_7 = arith.constant 0.000000e+00 : f32
    %29 = vector.broadcast %cst_7 : f32 to vector<5x128xf32>
    %30 = arith.select %28, %3, %29 : vector<5x128xi1>, vector<5x128xf32>
    %cst_8 = arith.constant dense<0.000000e+00> : vector<128xf32>
    %31 = vector.multi_reduction <add>, %30, %cst_8 [0] : vector<5x128xf32> to vector<128xf32>
    %32 = vector.shape_cast %31 : vector<128xf32> to vector<1x128xf32>
    %33 = arith.subf %26, %32 : vector<1x128xf32>
    %34 = vector.broadcast %5 : vector<1x128xi32> to vector<5x128xi32>
    %35 = arith.cmpi eq, %17, %34 : vector<5x128xi32>
    %cst_9 = arith.constant 0.000000e+00 : f32
    %36 = vector.broadcast %cst_9 : f32 to vector<5x128xf32>
    %37 = arith.select %35, %3, %36 : vector<5x128xi1>, vector<5x128xf32>
    %cst_10 = arith.constant dense<0.000000e+00> : vector<128xf32>
    %38 = vector.multi_reduction <add>, %37, %cst_10 [0] : vector<5x128xf32> to vector<128xf32>
    %39 = vector.shape_cast %38 : vector<128xf32> to vector<1x128xf32>
    %40 = arith.cmpf olt, %39, %19 : vector<1x128xf32>
    %41 = arith.andi %16, %40 : vector<1x128xi1>
    %cst_11 = arith.constant 0.000000e+00 : f32
    %42 = vector.broadcast %cst_11 : f32 to vector<1x128xf32>
    %43 = arith.select %16, %33, %42 : vector<1x128xi1>, vector<1x128xf32>
    %44 = arith.extui %16 : vector<1x128xi1> to vector<1x128xi32>
    %45 = arith.sitofp %44 : vector<1x128xi32> to vector<1x128xf32>
    %46 = arith.extui %41 : vector<1x128xi1> to vector<1x128xi32>
    %47 = arith.sitofp %46 : vector<1x128xi32> to vector<1x128xf32>
    %48 = tpu.iota {dimensions = array<i32: 0>} : vector<3x128xi32>
    %c0_i32_12 = arith.constant 0 : i32
    %49 = vector.broadcast %c0_i32_12 : i32 to vector<3x128xi32>
    %50 = arith.cmpi eq, %48, %49 : vector<3x128xi32>
    %c1_i32_13 = arith.constant 1 : i32
    %51 = vector.broadcast %c1_i32_13 : i32 to vector<3x128xi32>
    %52 = arith.cmpi eq, %48, %51 : vector<3x128xi32>
    %53 = vector.shape_cast %45 : vector<1x128xf32> to vector<1x128xf32>
    %54 = vector.broadcast %53 : vector<1x128xf32> to vector<3x128xf32>
    %55 = vector.shape_cast %47 : vector<1x128xf32> to vector<1x128xf32>
    %56 = vector.broadcast %55 : vector<1x128xf32> to vector<3x128xf32>
    %57 = arith.select %52, %54, %56 : vector<3x128xi1>, vector<3x128xf32>
    %58 = vector.shape_cast %43 : vector<1x128xf32> to vector<1x128xf32>
    %59 = vector.broadcast %58 : vector<1x128xf32> to vector<3x128xf32>
    %60 = arith.select %50, %59, %57 : vector<3x128xi1>, vector<3x128xf32>
    %c0_14 = arith.constant 0 : index
    %c0_15 = arith.constant 0 : index
    %c0_16 = arith.constant 0 : index
    %61 = vector.load %arg4[%c0_14, %c0_15, %c0_16] : memref<1x3x128xf32, #tpu.memory_space<vmem>>, vector<1x3x128xf32>
    %62 = vector.shape_cast %61 : vector<1x3x128xf32> to vector<3x128xf32>
    %63 = arith.addf %62, %60 : vector<3x128xf32>
    %c0_17 = arith.constant 0 : index
    %c0_18 = arith.constant 0 : index
    %c0_19 = arith.constant 0 : index
    %64 = vector.load %arg4[%c0_17, %c0_18, %c0_19] : memref<1x3x128xf32, #tpu.memory_space<vmem>>, vector<1x3x128xf32>
    %65 = vector.shape_cast %64 : vector<1x3x128xf32> to vector<3x128xf32>
    %66 = vector.shape_cast %63 : vector<3x128xf32> to vector<1x3x128xf32>
    tpu.vector_store %arg4[%c0_17, %c0_18, %c0_19], %66 {strides = array<i32>} : memref<1x3x128xf32, #tpu.memory_space<vmem>>, vector<1x3x128xf32>,
    return
  }
  func.func @transform_0(%arg0: i32, %arg1: i32) -> (i32, i32) {
    %c1_i32 = arith.constant 1 : i32
    %0 = arith.muli %arg0, %c1_i32 : i32
    %1 = arith.addi %0, %arg1 : i32
    %c0_i32 = arith.constant 0 : i32
    %2 = arith.minsi %1, %c0_i32 : i32
    %c0_i32_0 = arith.constant 0 : i32
    %c0_i32_1 = arith.constant 0 : i32
    return %c0_i32_0, %2 : i32, i32
  }
  func.func @transform_1(%arg0: i32, %arg1: i32) -> (i32, i32) {
    %c1_i32 = arith.constant 1 : i32
    %0 = arith.muli %arg0, %c1_i32 : i32
    %1 = arith.addi %0, %arg1 : i32
    %c0_i32 = arith.constant 0 : i32
    %2 = arith.minsi %1, %c0_i32 : i32
    %c0_i32_0 = arith.constant 0 : i32
    %c0_i32_1 = arith.constant 0 : i32
    return %c0_i32_0, %2 : i32, i32
  }
  func.func @transform_2(%arg0: i32, %arg1: i32) -> (i32, i32, i32) {
    %c0_i32 = arith.constant 0 : i32
    %c0_i32_0 = arith.constant 0 : i32
    %c0_i32_1 = arith.constant 0 : i32
    return %arg0, %c0_i32, %c0_i32_0 : i32, i32, i32
  }
}

</mosaic_0001>

<llo_original>
// kernel: tpu_custom_call.1
$region0: #{tpu_custom_call.1}
  #allocation0 [shape = 'u32[]', space=smem, size = 0x4, offset = 0x4, fixed_abs, tag = 'smem constant byte address 0x4 - core index']
  #allocation1 [shape = 'u32[144,128]{1,0:T(1,128)}', space=vmem, size = 0x12000, scoped, tag = 'internal scratch']
  %s0 = inlined_call_operand.hbm [shape: f32[5,32], index: 0, kind: input, shape index: {}]
  %s1 = inlined_call_operand.vmem [shape: s32[2,32], index: 1, kind: input, shape index: {}]
  %s2 = inlined_call_operand.vmem [shape: f32[1,3,128], index: 2, kind: output, shape index: {}]
  %s3 = sld [smem:[#allocation0]]
  $region26: #{tpu_custom_call.1} parent=0
    _
  %s5 = ssub.s32 1, %s3
  %s6 = scalar_select 0, %s5, %s3
  $region1: #{tpu_custom_call.1} parent=0
    #allocation2 [shape = 'u8[4096]{0}', space=vmem, size = 0x1000, scoped, tag = 'input window, operand 0, single buffered']
    #allocation3 [shape = 's32[1]{0}', space=sflag, size = 0x4, scoped, tag = 'scoped memory for tpu_custom_call.1']
    %7 = vsyncpa [#allocation3], 0
    // Predicated region
    $region2: #{tpu_custom_call.1} parent=1 // pred_check
      _
    $region3: #{tpu_custom_call.1} parent=1 // pred_check_branch
      %9 = sbr.rel (0) target = $region5
    $region4: #{tpu_custom_call.1} parent=1 // pred_region
      %s10 = sadd.s32 0, 0
      %p11 = scmp.lt.s32.totalorder %s10, 0
      %s12 = scalar_select %p11, %s10, 0
      %s14 = ssub.s32 128, 128
      %15 = vsyncadd [#allocation3], %s14
      %s16 = smul.addr %s12, 128
      %s17 = scalar_lea.hbm %s0, %s16
      %s19 = sshll.u32 [#allocation2], 4
      %s20 = int_to_ptr.vmem [resolvable:$true] %s19
      %22 = dma.hbm_to_vmem [thread:$0]  %s17, 128, %s20, [#allocation3]
    $region5: #{tpu_custom_call.1} parent=1 // pred_fallthru
      _
    // Predicated region
    $region6: #{tpu_custom_call.1} parent=1 // pred_check
      _
    $region7: #{tpu_custom_call.1} parent=1 // pred_check_branch
      %24 = sbr.rel (0) target = $region9
    $region8: #{tpu_custom_call.1} parent=1 // pred_region
      %s25 = sadd.s32 0, 0
      %p26 = scmp.lt.s32.totalorder %s25, 0
      %s27 = scalar_select %p26, %s25, 0
      %p28 = scmp.lt.s32.totalorder %s27, 0
      %s29 = scalar_select %p28, %s27, 0
      %s30 = smul.addr %s29, 2
      %s31 = scalar_lea.vmem %s1, %s30
      %s32 = sadd.s32 0, 0
      %p33 = scmp.lt.s32.totalorder %s32, 0
      %s34 = scalar_select %p33, %s32, 0
    $region9: #{tpu_custom_call.1} parent=1 // pred_fallthru
      _
    // Predicated region
    $region10: #{tpu_custom_call.1} parent=1 // pred_check
      _
    $region11: #{tpu_custom_call.1} parent=1 // pred_check_branch
      %36 = sbr.rel (0) target = $region13
    $region12: #{tpu_custom_call.1} parent=1 // pred_region
      %37 = dma.done [#allocation3], 128
    $region13: #{tpu_custom_call.1} parent=1 // pred_fallthru
      _
    %s38 = sadd.s32 0, 0
    %p39 = scmp.lt.s32.totalorder %s38, 0
    %s40 = scalar_select %p39, %s38, 0
    %p41 = scmp.lt.s32.totalorder %s40, 0
    %s42 = scalar_select %p41, %s40, 0
    %s43 = smul.addr %s42, 2
    %s44 = scalar_lea.vmem %s1, %s43
    %s45 = sadd.s32 0, 0
    %p46 = scmp.lt.s32.totalorder %s45, 0
    %s47 = scalar_select %p46, %s45, 0
    %s48 = sadd.s32 0, 0
    %p49 = scmp.lt.s32.totalorder %s48, 0
    %s50 = scalar_select %p49, %s48, 0
    %p51 = scmp.lt.s32.totalorder %s50, 0
    %s52 = scalar_select %p51, %s50, 0
    %s53 = smul.addr %s52, 2
    %s54 = scalar_lea.vmem %s1, %s53
    %s55 = sadd.s32 0, 0
    %p56 = scmp.lt.s32.totalorder %s55, 0
    %s57 = scalar_select %p56, %s55, 0
    %p58 = scmp.eq.s32.totalorder 0, 0
    // Predicated region
    $region14: #{tpu_custom_call.1} parent=1 // pred_check
      %p59 = pneg %p58
    $region15: #{tpu_custom_call.1} parent=1 // pred_check_branch
      %61 = sbr.rel (%p59) target = $region17
    $region16: #{tpu_custom_call.1} parent=1 // pred_region
      %62 = vst [vmem:[%s2] sm:$0x7] 0.0
    $region17: #{tpu_custom_call.1} parent=1 // pred_fallthru
      _
    %v63 = vld [vmem:[#allocation2] sm:$0x1f]
    %v64 = vld [vmem:[%s54] sm:$0x1]
    %v65 = vld [vmem:[%s54 + $0x1] sm:$0x1]
    %s66 = sadd.s32 0, 0
    %s67 = smul.u32 %s66, 128
    %v68 = vlaneseq
    %v69 = vand.u32 %v68, 127
    %v70 = vstv %s67
    %v71 = vadd.s32 %v70, %v69
    %vm72 = vcmp.lt.s32.totalorder %v71, 32
    %vm73 = vcmp.ge.s32.totalorder %v64, 0
    %vm74 = vmand %vm72, %vm73
    %v75 = vlaneseq
    %v76 = vshrl.u32 %v75, 7
    %vm77 = vcmask 1044480
    %v78 = vsel %vm77, %v63, -inf
    %v79 = vrot.slane %v78, 4
    %v80 = vmax.f32 %v78, %v79
    %v81 = vrot.slane %v80, 2
    %v82 = vmax.f32 %v80, %v81
    %v83 = vrot.slane %v82, 1
    %v84 = vmax.f32 %v82, %v83
    %v85 = vsub.f32 %v63, %v84
    %v86 = vmul.f32 %v85, 1.442695
    %v87 = vpow.pop %v86
    %v88 = vsel %vm77, %v87, 0.0
    %v89 = vrot.slane %v88, 4
    %v90 = vadd.f32 %v88, %v89
    %v91 = vrot.slane %v90, 2
    %v92 = vadd.f32 %v90, %v91
    %v93 = vrot.slane %v92, 1
    %v94 = vadd.f32 %v92, %v93
    %v95 = vlog2.pop %v94
    %v96 = vmul.f32 %v95, 0.6931472
    %v97 = vadd.f32 %v96, %v84
    %v98 = vlaneseq
    %v99 = vshrl.u32 %v98, 7
    %v100 = vsub.s32 0, %v99
    %v101 = vrot.slane %v64, %v100
    %vm102 = vcmp.eq.s32.totalorder %v76, %v101
    %v103 = vsel %vm102, %v63, 0.0
    %v104 = vsel %vm77, %v103, 0.0
    %v105 = vrot.slane %v104, 4
    %v106 = vadd.f32 %v104, %v105
    %v107 = vrot.slane %v106, 2
    %v108 = vadd.f32 %v106, %v107
    %v109 = vrot.slane %v108, 1
    %v110 = vadd.f32 %v108, %v109
    %v111 = vsub.f32 %v97, %v110
    %v112 = vlaneseq
    %v113 = vshrl.u32 %v112, 7
    %v114 = vsub.s32 0, %v113
    %v115 = vrot.slane %v65, %v114
    %vm116 = vcmp.eq.s32.totalorder %v76, %v115
    %v117 = vsel %vm116, %v63, 0.0
    %v118 = vsel %vm77, %v117, 0.0
    %v119 = vrot.slane %v118, 4
    %v120 = vadd.f32 %v118, %v119
    %v121 = vrot.slane %v120, 2
    %v122 = vadd.f32 %v120, %v121
    %v123 = vrot.slane %v122, 1
    %v124 = vadd.f32 %v122, %v123
    %vm125 = vcmp.lt.f32.partialorder %v124, %v84
    %vm126 = vmand %vm74, %vm125
    %v127 = vsel %vm74, %v111, 0.0
    %v128 = vsel %vm74, 1, 0
    %v129 = vcvt.s32.f32 %v128
    %v130 = vsel %vm126, 1, 0
    %v131 = vcvt.s32.f32 %v130
    %vm132 = vcmp.eq.s32.totalorder %v76, 0
    %vm133 = vcmp.eq.s32.totalorder %v76, 1
    %v134 = vlaneseq
    %v135 = vshrl.u32 %v134, 7
    %v136 = vsub.s32 0, %v135
    %v137 = vrot.slane %v129, %v136
    %v138 = vlaneseq
    %v139 = vshrl.u32 %v138, 7
    %v140 = vsub.s32 0, %v139
    %v141 = vrot.slane %v131, %v140
    %v142 = vsel %vm133, %v137, %v141
    %v143 = vlaneseq
    %v144 = vshrl.u32 %v143, 7
    %v145 = vsub.s32 0, %v144
    %v146 = vrot.slane %v127, %v145
    %v147 = vsel %vm132, %v146, %v142
    %v148 = vld [vmem:[%s2] sm:$0x7]
    %v149 = vadd.f32 %v148, %v147
    %150 = vst [vmem:[%s2] sm:$0x7] %v149
    // Predicated region
    $region18: #{tpu_custom_call.1} parent=1 // pred_check
      _
    $region19: #{tpu_custom_call.1} parent=1 // pred_check_branch
      %152 = sbr.rel (0) target = $region21
    $region20: #{tpu_custom_call.1} parent=1 // pred_region
      _
    $region21: #{tpu_custom_call.1} parent=1 // pred_fallthru
      _
    // Predicated region
    $region22: #{tpu_custom_call.1} parent=1 // pred_check
      _
    $region23: #{tpu_custom_call.1} parent=1 // pred_check_branch
      %154 = sbr.rel (0) target = $region25
    $region24: #{tpu_custom_call.1} parent=1 // pred_region
      _
    $region25: #{tpu_custom_call.1} parent=1 // pred_fallthru
      _
    %155 = vsyncpa [#allocation3], 1

</llo_original>
